<compile_context>
chip_gen: v5e
topology: v5e:2x2
jax: 0.10.0
libtpu: 0.0.40
codegen_flags: <defaults>
</compile_context>

<pallas_src>
import jax
import jax.numpy as jnp
from jax.experimental import pallas as pl
from jax.experimental.pallas import tpu as pltpu


# ----------------------------------------------------------------------------
# Kernels (pure MXU matmuls, f32 accumulation, lane-dense output tiles)
# ----------------------------------------------------------------------------
def _rmat_kernel(x_ref, m_ref, o_ref):
    # (tm, K) @ (K, tn) -> (tm, tn)
    o_ref[...] = jnp.dot(x_ref[...], m_ref[...],
                         preferred_element_type=jnp.float32).astype(o_ref.dtype)


def _lmat_bias_kernel(g_ref, y_ref, b_ref, o_ref):
    # (tr, K2) @ (K2, tn) + bias -> (tr, tn), per-batch (leading block dim = 1)
    acc = jnp.dot(g_ref[...], y_ref[0], preferred_element_type=jnp.float32)
    o_ref[0] = (acc + b_ref[...]).astype(o_ref.dtype)


def _lmat_kernel(m_ref, y_ref, o_ref):
    # (Do, D) @ (D, tn) -> (Do, tn), per (batch*channel)
    o_ref[0] = jnp.dot(m_ref[...], y_ref[0],
                       preferred_element_type=jnp.float32).astype(o_ref.dtype)


# ----------------------------------------------------------------------------
# Tiling / compiler-param helpers
# ----------------------------------------------------------------------------
_VMEM_BUDGET = 16 << 20  # per-call double-buffered block budget (works on v5e/v6e/v7x)


def _shrink_sublane(t):
    return max(64, (t // 2) // 8 * 8)


def _shrink_lane(t):
    return max(128, (t // 2) // 128 * 128)


def _mosaic_params(n_axes, footprint_bytes):
    # Explicit VMEM budgeting (esp. for v7x's 64 MiB physical VMEM); all grid axes
    # are fully parallel (no cross-step accumulation) so they can shard across TCs.
    vmem = int(min(max(footprint_bytes + (4 << 20), 32 << 20), 48 << 20))
    return pltpu.CompilerParams(
        dimension_semantics=("parallel",) * n_axes,
        vmem_limit_bytes=vmem)


def _hw_matmul(x2, mhw, out_dtype):
    """(M, K) @ (K, S) with lane-dense output tiles, cdiv grid."""
    M, K = x2.shape
    _, S = mhw.shape
    tm = M if M <= 512 else 512
    tn = S if S <= 512 else 512
    fp = lambda a, b: 2 * 4 * (a * K + K * b + a * b)  # double-buffered blocks (f32)
    while fp(tm, tn) > _VMEM_BUDGET and tm > 64:
        tm = _shrink_sublane(tm)
    while fp(tm, tn) > _VMEM_BUDGET and tn > 128:
        tn = _shrink_lane(tn)
    grid = (pl.cdiv(M, tm), pl.cdiv(S, tn))
    return pl.pallas_call(
        _rmat_kernel,
        out_shape=jax.ShapeDtypeStruct((M, S), out_dtype),
        grid=grid,
        in_specs=[pl.BlockSpec((tm, K), lambda i, j: (i, 0)),
                  pl.BlockSpec((K, tn), lambda i, j: (0, j))],
        out_specs=pl.BlockSpec((tm, tn), lambda i, j: (i, j)),
        compiler_params=_mosaic_params(2, fp(tm, tn)),
    )(x2, mhw)


def _conv_d_matmul(g, y3, b_rep, out_dtype):
    """Per-batch (R2, K2) @ (K2, S) + bias; grid over (batch, R2 tiles, S tiles)."""
    Nb, K2, S = y3.shape
    R2 = g.shape[0]
    # TODO(synk): add a K grid axis + f32 VMEM accumulator if C_in*D grows beyond ~1k.
    tr = R2 if R2 <= 512 else 512
    tn = S if S <= 512 else 512
    fp = lambda a, b: 2 * 4 * (a * K2 + K2 * b + a * b + a)
    while fp(tr, tn) > _VMEM_BUDGET and tr > 64:
        tr = _shrink_sublane(tr)
    while fp(tr, tn) > _VMEM_BUDGET and tn > 128:
        tn = _shrink_lane(tn)
    grid = (Nb, pl.cdiv(R2, tr), pl.cdiv(S, tn))
    return pl.pallas_call(
        _lmat_bias_kernel,
        out_shape=jax.ShapeDtypeStruct((Nb, R2, S), out_dtype),
        grid=grid,
        in_specs=[pl.BlockSpec((tr, K2), lambda n, r, j: (r, 0)),
                  pl.BlockSpec((1, K2, tn), lambda n, r, j: (n, 0, j)),
                  pl.BlockSpec((tr, 1), lambda n, r, j: (r, 0))],
        out_specs=pl.BlockSpec((1, tr, tn), lambda n, r, j: (n, r, j)),
        compiler_params=_mosaic_params(3, fp(tr, tn)),
    )(g, y3, b_rep)


def _d_matmul(mdT, y3, out_dtype):
    """Per-(batch*channel) (Do, D) @ (D, S); used when there is no conv."""
    Nb, D, S = y3.shape
    Do = mdT.shape[0]
    tn = S if S <= 512 else 512
    fp = lambda b: 2 * 4 * (Do * D + D * b + Do * b)
    while fp(tn) > _VMEM_BUDGET and tn > 128:
        tn = _shrink_lane(tn)
    grid = (Nb, pl.cdiv(S, tn))
    return pl.pallas_call(
        _lmat_kernel,
        out_shape=jax.ShapeDtypeStruct((Nb, Do, S), out_dtype),
        grid=grid,
        in_specs=[pl.BlockSpec((Do, D), lambda n, j: (0, 0)),
                  pl.BlockSpec((1, D, tn), lambda n, j: (n, 0, j))],
        out_specs=pl.BlockSpec((1, Do, tn), lambda n, j: (n, 0, j)),
        compiler_params=_mosaic_params(2, fp(tn)),
    )(mdT, y3)


# ----------------------------------------------------------------------------
# Trilinear (align_corners=False) interpolation matrix, per axis.
# Matches PyTorch F.interpolate(mode='trilinear') source-index math:
#   src = max(0, (dst + 0.5) * in/out - 0.5); i0 = floor(src); i1 = min(i0+1, in-1)
# ----------------------------------------------------------------------------
def trilinear_matrix(in_size, out_size, dtype=jnp.float32):
    if in_size == out_size:
        return jnp.eye(in_size, dtype=dtype)
    scale = in_size / out_size
    dst = jnp.arange(out_size, dtype=jnp.float32)
    src = jnp.maximum((dst + 0.5) * scale - 0.5, 0.0)
    i0 = jnp.clip(jnp.floor(src).astype(jnp.int32), 0, in_size - 1)
    i1 = jnp.minimum(i0 + 1, in_size - 1)
    lam = src - i0.astype(jnp.float32)
    cols = jnp.arange(out_size)
    m = jnp.zeros((in_size, out_size), dtype=dtype)
    m = m.at[i0, cols].add(1.0 - lam)
    m = m.at[i1, cols].add(lam)
    return m
# TODO(synk): for very large spatial extents on v5e a 2-tap VPU lerp variant would
# avoid the dense interpolation-matrix FLOP blowup; the matmul form is used here.


# ----------------------------------------------------------------------------
# Fused forward: (optional 1x1x1 conv) + trilinear upsample, two pallas_calls.
# ----------------------------------------------------------------------------
def upsample_trilinear(x, size, weight=None, bias=None):
    N, C_in, D, H, W = x.shape
    Do, Ho, Wo = size
    out_dtype = x.dtype
    S = Ho * Wo

    Mw = trilinear_matrix(W, Wo)
    Mh = trilinear_matrix(H, Ho)
    Md = trilinear_matrix(D, Do)
    Mhw = jnp.kron(Mh, Mw)                       # (H*W, Ho*Wo)

    # Pass 1: H/W interpolation as a single lane-dense matmul (no transposes).
    x2 = x.reshape(N * C_in * D, H * W)          # free contiguous reshape
    y1 = _hw_matmul(x2, Mhw, out_dtype)          # (N*C_in*D, Ho*Wo)

    if weight is not None:
        # Pass 2: fused 1x1x1 conv (over C_in) + D interpolation via kron(W, Md^T).
        C_out = weight.shape[0]
        G = jnp.kron(weight.astype(jnp.float32), Md.T)   # (C_out*Do, C_in*D)
        b_rep = jnp.repeat(bias.astype(jnp.float32), Do)[:, None]  # (C_out*Do, 1)
        y3 = y1.reshape(N, C_in * D, S)
        out = _conv_d_matmul(G, y3, b_rep, out_dtype)    # (N, C_out*Do, S)
        return out.reshape(N, C_out, Do, Ho, Wo)
    else:
        # Pass 2: D interpolation only.
        y3 = y1.reshape(N * C_in, D, S)
        out = _d_matmul(Md.T, y3, out_dtype)             # (N*C_in, Do, S)
        return out.reshape(N, C_in, Do, Ho, Wo)


# ----------------------------------------------------------------------------
# Module equivalent
# ----------------------------------------------------------------------------
class UpsamplingPallas:
    """JAX/Pallas port of `Upsampling`.

    transposed_conv=True -> 1x1x1 Conv3d (in_channels -> out_channels) + trilinear
    upsample to the target size; transposed_conv=False -> interpolation only.
    """

    def __init__(self, transposed_conv, in_channels=None, out_channels=None,
                 kernel_size=3, scale_factor=(2, 2, 2), mode='trilinear', key=None):
        self.mode = mode
        if transposed_conv:
            # nn.Conv3d(in_channels, out_channels, 1) default init:
            # U(-1/sqrt(fan_in), 1/sqrt(fan_in)) with fan_in = in_channels
            kw, kb = jax.random.split(key)
            bound = 1.0 / float(in_channels) ** 0.5
            self.weight = jax.random.uniform(
                kw, (out_channels, in_channels), jnp.float32, -bound, bound)
            self.bias = jax.random.uniform(
                kb, (out_channels,), jnp.float32, -bound, bound)
        else:
            self.weight = None
            self.bias = None

    def __call__(self, encoder_features, x, up_size):
        if encoder_features is not None:
            if isinstance(encoder_features, list):
                output_size = tuple(encoder_features[0].shape[2:])
            else:
                output_size = tuple(encoder_features.shape[2:])
        else:
            output_size = tuple(up_size)
        if self.mode != 'trilinear':
            # TODO(synk): 'nearest'/'area'/'linear'/'bilinear' modes not implemented.
            raise NotImplementedError(self.mode)
        return upsample_trilinear(x, output_size, self.weight, self.bias)


# ----------------------------------------------------------------------------
# Pure-JAX reference (gather-based trilinear, same PyTorch index math)
# ----------------------------------------------------------------------------
def ref_trilinear(x, size):
    N, C, D, H, W = x.shape
    Do, Ho, Wo = size

    def axis_idx(in_s, out_s):
        dst = jnp.arange(out_s, dtype=jnp.float32)
        src = jnp.maximum((dst + 0.5) * (in_s / out_s) - 0.5, 0.0)
        i0 = jnp.clip(jnp.floor(src).astype(jnp.int32), 0, in_s - 1)
        i1 = jnp.minimum(i0 + 1, in_s - 1)
        lam = src - i0.astype(jnp.float32)
        return i0, i1, lam

    d0, d1, ld = axis_idx(D, Do)
    h0, h1, lh = axis_idx(H, Ho)
    w0, w1, lw = axis_idx(W, Wo)
    xd = (x[:, :, d0] * (1 - ld)[None, None, :, None, None]
          + x[:, :, d1] * ld[None, None, :, None, None])
    xh = (xd[:, :, :, h0] * (1 - lh)[None, None, None, :, None]
          + xd[:, :, :, h1] * lh[None, None, None, :, None])
    xw = xh[:, :, :, :, w0] * (1 - lw) + xh[:, :, :, :, w1] * lw
    return xw


if __name__ == "__main__":
    key = jax.random.PRNGKey(0)
    k_x, k_enc, k_mod = jax.random.split(key, 3)

    N, C_in, C_out = 2, 4, 8
    D = H = W = 8
    Do = Ho = Wo = 16

    x = jax.random.normal(k_x, (N, C_in, D, H, W), jnp.float32)
    # encoder skip features supply the target spatial size (UNet-style)
    encoder_features = jax.random.normal(k_enc, (N, C_out, Do, Ho, Wo), jnp.float32)

    # --- conv + trilinear path ------------------------------------------------
    module = UpsamplingPallas(transposed_conv=True, in_channels=C_in,
                              out_channels=C_out, mode='trilinear', key=k_mod)
    out = module(encoder_features, x, up_size=None)
    out = jax.block_until_ready(out)
    assert out.shape == (N, C_out, Do, Ho, Wo), out.shape

    y_conv = (jnp.einsum('ncdhw,oc->nodhw', x, module.weight)
              + module.bias[None, :, None, None, None])
    ref = ref_trilinear(y_conv, (Do, Ho, Wo))
    err = float(jnp.max(jnp.abs(out - ref)))
    assert jnp.allclose(out, ref, atol=1e-3, rtol=1e-3), err

    # --- interpolation-only path ---------------------------------------------
    mod2 = UpsamplingPallas(transposed_conv=False, mode='trilinear')
    out2 = jax.block_until_ready(mod2(None, x, up_size=(Do, Ho, Wo)))
    ref2 = ref_trilinear(x, (Do, Ho, Wo))
    err2 = float(jnp.max(jnp.abs(out2 - ref2)))
    assert out2.shape == (N, C_in, Do, Ho, Wo), out2.shape
    assert jnp.allclose(out2, ref2, atol=1e-3, rtol=1e-3), err2

    print("KERNEL_OK")
</pallas_src>

<mosaic_0001>
module attributes {stable_mosaic.version = 11 : i64} {
  func.func @_rmat_kernel(%arg0: i32, %arg1: i32, %arg2: memref<64x64xf32, #tpu.memory_space<vmem>>, %arg3: memref<64x256xf32, #tpu.memory_space<vmem>>, %arg4: memref<64x256xf32, #tpu.memory_space<vmem>>) attributes {dimension_semantics = [#tpu.dimension_semantics<parallel>, #tpu.dimension_semantics<parallel>], iteration_bounds = array<i64: 1, 1>, scalar_prefetch = 0 : i64, scratch_operands = 0 : i64, tpu.core_type = #tpu.core_type<tc>, window_params = [{transform_indices = @transform_0, window_bounds = array<i64: 64, 64>}, {transform_indices = @transform_1, window_bounds = array<i64: 64, 256>}, {transform_indices = @transform_2, window_bounds = array<i64: 64, 256>}]} {
    %c0 = arith.constant 0 : index
    %c0_0 = arith.constant 0 : index
    %0 = vector.load %arg2[%c0, %c0_0] : memref<64x64xf32, #tpu.memory_space<vmem>>, vector<64x64xf32>
    %c0_1 = arith.constant 0 : index
    %c0_2 = arith.constant 0 : index
    %1 = vector.load %arg3[%c0_1, %c0_2] : memref<64x256xf32, #tpu.memory_space<vmem>>, vector<64x256xf32>
    %cst = arith.constant dense<0.000000e+00> : vector<64x256xf32>
    %2 = tpu.matmul %0, %1, %cst {dimension_numbers = #tpu.dot_dimension_numbers<[1], [0], [0], [1], [0, 0, 1, 1], [], []>} : vector<64x64xf32>, vector<64x256xf32>, vector<64x256xf32> -> vector<64x256xf32>
    %c0_3 = arith.constant 0 : index
    %c0_4 = arith.constant 0 : index
    %3 = vector.load %arg4[%c0_3, %c0_4] : memref<64x256xf32, #tpu.memory_space<vmem>>, vector<64x256xf32>
    tpu.vector_store %arg4[%c0_3, %c0_4], %2 {strides = array<i32>} : memref<64x256xf32, #tpu.memory_space<vmem>>, vector<64x256xf32>,
    return
  }
  func.func @transform_0(%arg0: i32, %arg1: i32) -> (i32, i32) {
    %c0_i32 = arith.constant 0 : i32
    %c0_i32_0 = arith.constant 0 : i32
    return %arg0, %c0_i32 : i32, i32
  }
  func.func @transform_1(%arg0: i32, %arg1: i32) -> (i32, i32) {
    %c0_i32 = arith.constant 0 : i32
    %c0_i32_0 = arith.constant 0 : i32
    return %c0_i32, %arg1 : i32, i32
  }
  func.func @transform_2(%arg0: i32, %arg1: i32) -> (i32, i32) {
    %c0_i32 = arith.constant 0 : i32
    return %arg0, %arg1 : i32, i32
  }
}

</mosaic_0001>

<llo_original>
// kernel: tpu_custom_call.1
$region0: #{tpu_custom_call.1}
  #allocation0 [shape = 'u32[]', space=smem, size = 0x4, offset = 0x4, fixed_abs, tag = 'smem constant byte address 0x4 - core index']
  #allocation1 [shape = 'u32[72,128]{1,0:T(1,128)}', space=vmem, size = 0x9000, scoped, tag = 'internal scratch']
  %s0 = inlined_call_operand.hbm [shape: f32[64,64], index: 0, kind: input, shape index: {}]
  %s1 = inlined_call_operand.hbm [shape: f32[64,256], index: 1, kind: input, shape index: {}]
  %s2 = inlined_call_operand.hbm [shape: f32[64,256], index: 2, kind: output, shape index: {}]
  %s3 = sld [smem:[#allocation0]]
  $region26: #{tpu_custom_call.1} parent=0
    _
  %s5 = ssub.s32 1, %s3
  %s6 = scalar_select 0, %s5, %s3
  $region1: #{tpu_custom_call.1} parent=0
    #allocation2 [shape = 'u8[32768]{0}', space=vmem, size = 0x8000, scoped, tag = 'input window, operand 0, single buffered']
    #allocation3 [shape = 's32[1]{0}', space=sflag, size = 0x4, scoped, tag = 'scoped memory for tpu_custom_call.1']
    #allocation4 [shape = 's32[1]{0}', space=sflag, size = 0x4, scoped, tag = 'scoped memory for tpu_custom_call.1']
    #allocation5 [shape = 'u8[65536]{0}', space=vmem, size = 0x10000, scoped, tag = 'input window, operand 1, single buffered']
    #allocation6 [shape = 's32[1]{0}', space=sflag, size = 0x4, scoped, tag = 'scoped memory for tpu_custom_call.1']
    #allocation7 [shape = 'u8[65536]{0}', space=vmem, size = 0x10000, scoped, tag = 'output window, operand 0, single buffered']
    %7 = vsyncpa [#allocation3], 0
    %8 = vsyncpa [#allocation6], 0
    %9 = vsyncpa [#allocation4], 0
    // Predicated region
    $region2: #{tpu_custom_call.1} parent=1 // pred_check
      _
    $region3: #{tpu_custom_call.1} parent=1 // pred_check_branch
      %11 = sbr.rel (0) target = $region5
    $region4: #{tpu_custom_call.1} parent=1 // pred_region
      %13 = vsyncadd [#allocation3], 0
      %s14 = sshll.u32 %s0, 4
      %s15 = int_to_ptr.hbm [resolvable:$true] %s14
      %s16 = sshll.u32 [#allocation2], 4
      %s17 = int_to_ptr.vmem [resolvable:$true] %s16
      %22 = dma.hbm_to_vmem [thread:$0]  %s15, 1024, %s17, [#allocation3], 128, 128, 8
    $region5: #{tpu_custom_call.1} parent=1 // pred_fallthru
      _
    // Predicated region
    $region6: #{tpu_custom_call.1} parent=1 // pred_check
      _
    $region7: #{tpu_custom_call.1} parent=1 // pred_check_branch
      %24 = sbr.rel (0) target = $region9
    $region8: #{tpu_custom_call.1} parent=1 // pred_region
      %26 = vsyncadd [#allocation6], 0
      %s27 = sshll.u32 %s1, 4
      %s28 = int_to_ptr.hbm [resolvable:$true] %s27
      %s29 = sshll.u32 [#allocation5], 4
      %s30 = int_to_ptr.vmem [resolvable:$true] %s29
      %35 = dma.hbm_to_vmem [thread:$0]  %s28, 2048, %s30, [#allocation6], 256, 256, 16
    $region9: #{tpu_custom_call.1} parent=1 // pred_fallthru
      _
    // Predicated region
    $region10: #{tpu_custom_call.1} parent=1 // pred_check
      _
    $region11: #{tpu_custom_call.1} parent=1 // pred_check_branch
      %37 = sbr.rel (0) target = $region13
    $region12: #{tpu_custom_call.1} parent=1 // pred_region
      %39 = dma.done [#allocation3], 1024
    $region13: #{tpu_custom_call.1} parent=1 // pred_fallthru
      _
    // Predicated region
    $region14: #{tpu_custom_call.1} parent=1 // pred_check
      _
    $region15: #{tpu_custom_call.1} parent=1 // pred_check_branch
      %41 = sbr.rel (0) target = $region17
    $region16: #{tpu_custom_call.1} parent=1 // pred_region
      %43 = dma.done [#allocation6], 2048
    $region17: #{tpu_custom_call.1} parent=1 // pred_fallthru
      _
    %v44 = vld [vmem:[#allocation2] sm:$0xff]
    %v45 = vld [vmem:[#allocation2 + $0x8] sm:$0xff]
    %v46 = vld [vmem:[#allocation2 + $0x10] sm:$0xff]
    %v47 = vld [vmem:[#allocation2 + $0x18] sm:$0xff]
    %v48 = vld [vmem:[#allocation2 + $0x20] sm:$0xff]
    %v49 = vld [vmem:[#allocation2 + $0x28] sm:$0xff]
    %v50 = vld [vmem:[#allocation2 + $0x30] sm:$0xff]
    %v51 = vld [vmem:[#allocation2 + $0x38] sm:$0xff]
    %v52 = vld [vmem:[#allocation5] sm:$0xff]
    %v53 = vld [vmem:[#allocation5 + $0x8] sm:$0xff]
    %v54 = vld [vmem:[#allocation5 + $0x10] sm:$0xff]
    %v55 = vld [vmem:[#allocation5 + $0x18] sm:$0xff]
    %v56 = vld [vmem:[#allocation5 + $0x20] sm:$0xff]
    %v57 = vld [vmem:[#allocation5 + $0x28] sm:$0xff]
    %v58 = vld [vmem:[#allocation5 + $0x30] sm:$0xff]
    %v59 = vld [vmem:[#allocation5 + $0x38] sm:$0xff]
    %v60 = vld [vmem:[#allocation5 + $0x40] sm:$0xff]
    %v61 = vld [vmem:[#allocation5 + $0x48] sm:$0xff]
    %v62 = vld [vmem:[#allocation5 + $0x50] sm:$0xff]
    %v63 = vld [vmem:[#allocation5 + $0x58] sm:$0xff]
    %v64 = vld [vmem:[#allocation5 + $0x60] sm:$0xff]
    %v65 = vld [vmem:[#allocation5 + $0x68] sm:$0xff]
    %v66 = vld [vmem:[#allocation5 + $0x70] sm:$0xff]
    %v67 = vld [vmem:[#allocation5 + $0x78] sm:$0xff]
    %vm68 = vcmask 523264
    %v70 = vsel %vm68, %v44, 0
    %v73 = vsel %vm68, %v45, 0
    %v76 = vsel %vm68, %v46, 0
    %v79 = vsel %vm68, %v47, 0
    %v82 = vsel %vm68, %v48, 0
    %v85 = vsel %vm68, %v49, 0
    %v88 = vsel %vm68, %v50, 0
    %v91 = vsel %vm68, %v51, 0
    %93 = vmatpush.msra.mxu0 0.0
    %94 = vmatpush.msra.mxu0 0.0
    %95 = vmatpush.msra.mxu0 0.0
    %96 = vmatpush.msra.mxu0 0.0
    %97 = vmatpush.msra.mxu0 0.0
    %98 = vmatpush.msra.mxu0 0.0
    %99 = vmatpush.msra.mxu0 0.0
    %100 = vmatpush.msra.mxu0 0.0
    %101 = vmatpush.msra.mxu0 %v66
    %102 = vmatpush.msra.mxu0 %v64
    %103 = vmatpush.msra.mxu0 %v62
    %104 = vmatpush.msra.mxu0 %v60
    %105 = vmatpush.msra.mxu0 %v58
    %106 = vmatpush.msra.mxu0 %v56
    %107 = vmatpush.msra.mxu0 %v54
    %108 = vmatpush.msra.mxu0 %v52
    %109 = vmatmul.f32.gmra.mxu0 %v70
    %v110 = vpop.f32.mrf.mxu0
    %v111 = vadd.f32 0.0, %v110
    %112 = vmatmul.f32.gmra.mxu0 %v73
    %v113 = vpop.f32.mrf.mxu0
    %v114 = vadd.f32 0.0, %v113
    %115 = vmatmul.f32.gmra.mxu0 %v76
    %v116 = vpop.f32.mrf.mxu0
    %v117 = vadd.f32 0.0, %v116
    %118 = vmatmul.f32.gmra.mxu0 %v79
    %v119 = vpop.f32.mrf.mxu0
    %v120 = vadd.f32 0.0, %v119
    %121 = vmatmul.f32.gmra.mxu0 %v82
    %v122 = vpop.f32.mrf.mxu0
    %v123 = vadd.f32 0.0, %v122
    %124 = vmatmul.f32.gmra.mxu0 %v85
    %v125 = vpop.f32.mrf.mxu0
    %v126 = vadd.f32 0.0, %v125
    %127 = vmatmul.f32.gmra.mxu0 %v88
    %v128 = vpop.f32.mrf.mxu0
    %v129 = vadd.f32 0.0, %v128
    %130 = vmatmul.f32.gmra.mxu0 %v91
    %v131 = vpop.f32.mrf.mxu0
    %v132 = vadd.f32 0.0, %v131
    %133 = vdwg.mxu0
    %134 = vmatpush.msra.mxu0 0.0
    %135 = vmatpush.msra.mxu0 0.0
    %136 = vmatpush.msra.mxu0 0.0
    %137 = vmatpush.msra.mxu0 0.0
    %138 = vmatpush.msra.mxu0 0.0
    %139 = vmatpush.msra.mxu0 0.0
    %140 = vmatpush.msra.mxu0 0.0
    %141 = vmatpush.msra.mxu0 0.0
    %142 = vmatpush.msra.mxu0 %v67
    %143 = vmatpush.msra.mxu0 %v65
    %144 = vmatpush.msra.mxu0 %v63
    %145 = vmatpush.msra.mxu0 %v61
    %146 = vmatpush.msra.mxu0 %v59
    %147 = vmatpush.msra.mxu0 %v57
    %148 = vmatpush.msra.mxu0 %v55
    %149 = vmatpush.msra.mxu0 %v53
    %150 = vmatmul.f32.gmra.mxu0 %v70
    %v151 = vpop.f32.mrf.mxu0
    %v152 = vadd.f32 0.0, %v151
    %153 = vmatmul.f32.gmra.mxu0 %v73
    %v154 = vpop.f32.mrf.mxu0
    %v155 = vadd.f32 0.0, %v154
    %156 = vmatmul.f32.gmra.mxu0 %v76
    %v157 = vpop.f32.mrf.mxu0
    %v158 = vadd.f32 0.0, %v157
    %159 = vmatmul.f32.gmra.mxu0 %v79
    %v160 = vpop.f32.mrf.mxu0
    %v161 = vadd.f32 0.0, %v160
    %162 = vmatmul.f32.gmra.mxu0 %v82
    %v163 = vpop.f32.mrf.mxu0
    %v164 = vadd.f32 0.0, %v163
    %165 = vmatmul.f32.gmra.mxu0 %v85
    %v166 = vpop.f32.mrf.mxu0
    %v167 = vadd.f32 0.0, %v166
    %168 = vmatmul.f32.gmra.mxu0 %v88
    %v169 = vpop.f32.mrf.mxu0
    %v170 = vadd.f32 0.0, %v169
    %171 = vmatmul.f32.gmra.mxu0 %v91
    %v172 = vpop.f32.mrf.mxu0
    %v173 = vadd.f32 0.0, %v172
    %174 = vdwg.mxu0
    %175 = vst [vmem:[#allocation7] sm:$0xff] %v111
    %176 = vst [vmem:[#allocation7 + $0x8] sm:$0xff] %v152
    %177 = vst [vmem:[#allocation7 + $0x10] sm:$0xff] %v114
    %178 = vst [vmem:[#allocation7 + $0x18] sm:$0xff] %v155
    %179 = vst [vmem:[#allocation7 + $0x20] sm:$0xff] %v117
    %180 = vst [vmem:[#allocation7 + $0x28] sm:$0xff] %v158
    %181 = vst [vmem:[#allocation7 + $0x30] sm:$0xff] %v120
    %182 = vst [vmem:[#allocation7 + $0x38] sm:$0xff] %v161
    %183 = vst [vmem:[#allocation7 + $0x40] sm:$0xff] %v123
    %184 = vst [vmem:[#allocation7 + $0x48] sm:$0xff] %v164
    %185 = vst [vmem:[#allocation7 + $0x50] sm:$0xff] %v126
    %186 = vst [vmem:[#allocation7 + $0x58] sm:$0xff] %v167
    %187 = vst [vmem:[#allocation7 + $0x60] sm:$0xff] %v129
    %188 = vst [vmem:[#allocation7 + $0x68] sm:$0xff] %v170
    %189 = vst [vmem:[#allocation7 + $0x70] sm:$0xff] %v132
    %190 = vst [vmem:[#allocation7 + $0x78] sm:$0xff] %v173
    // Predicated region
    $region18: #{tpu_custom_call.1} parent=1 // pred_check
      _
    $region19: #{tpu_custom_call.1} parent=1 // pred_check_branch
      %192 = sbr.rel (0) target = $region21
    $region20: #{tpu_custom_call.1} parent=1 // pred_region
      %194 = vsyncadd [#allocation4], 0
      %s195 = sshll.u32 [#allocation7], 4
      %s196 = int_to_ptr.vmem [resolvable:$true] %s195
      %s197 = sshll.u32 %s2, 4
      %s198 = int_to_ptr.hbm [resolvable:$true] %s197
      %203 = dma.vmem_to_hbm [thread:$0]  %s196, 2048, %s198, [#allocation4], 256, 256, 16
    $region21: #{tpu_custom_call.1} parent=1 // pred_fallthru
      _
    // Predicated region
    $region22: #{tpu_custom_call.1} parent=1 // pred_check
      _
    $region23: #{tpu_custom_call.1} parent=1 // pred_check_branch
      %205 = sbr.rel (0) target = $region25
    $region24: #{tpu_custom_call.1} parent=1 // pred_region
      %207 = dma.done [#allocation4], 2048
    $region25: #{tpu_custom_call.1} parent=1 // pred_fallthru
      _
    %208 = vsyncpa [#allocation3], 1
    %209 = vsyncpa [#allocation6], 1
    %210 = vsyncpa [#allocation4], 1

</llo_original>
